<compile_context>
chip_gen: v6e
topology: v6e:2x2x1
jax: 0.10.0
libtpu: 0.0.40
codegen_flags: <defaults>
</compile_context>

<pallas_src>
import functools

import jax
import jax.numpy as jnp
from jax.experimental import pallas as pl
from jax.experimental.pallas import tpu as pltpu


def _round_up(x, m):
    return ((x + m - 1) // m) * m


def _luong_attention_kernel(s_ref, h_ref, ctx_ref, m_sc, l_sc, acc_sc, *,
                            seq_len, ts, mask_tail):
    # s_ref:   (1, BD)   decoder state flattened over (batch, hidden), resident
    # h_ref:   (BD, ts)  encoder hiddens tile: rows = flattened (b, d), lanes = time
    # ctx_ref: (BD, 1)   flattened context (written once, in finalize)
    # scratch: m_sc (1,1) running max, l_sc (1,1) running denom, acc_sc (BD,1) running ctx
    si = pl.program_id(0)

    @pl.when(si == 0)
    def _init():
        m_sc[...] = jnp.full_like(m_sc, -jnp.inf)
        l_sc[...] = jnp.zeros_like(l_sc)
        acc_sc[...] = jnp.zeros_like(acc_sc)

    s = s_ref[...]                                   # (1, BD)  native dtype
    h = h_ref[...]                                   # (BD, ts) native dtype

    if mask_tail:
        # Lane positions of this tile along S; zero the out-of-bounds tail of the boundary
        # block so garbage can never poison the MXU accumulations.
        pos = si * ts + jax.lax.broadcasted_iota(jnp.int32, (1, ts), 1)
        valid = pos < seq_len                        # (1, ts), broadcasts over sublanes
        h = jnp.where(valid, h, jnp.zeros_like(h))

    # score[t] = sum_{b,d} s[b,d] * h[b,t,d]: one lane-dense (1,BD) @ (BD,ts) MXU matmul.
    score = jnp.dot(s, h, preferred_element_type=jnp.float32,
                    precision=jax.lax.Precision.HIGHEST)           # (1, ts) f32
    if mask_tail:
        score = jnp.where(valid, score, -jnp.inf)

    # Online softmax over the single, batch-shared score row.
    m_prev = m_sc[...]                                              # (1, 1)
    m_new = jnp.maximum(m_prev, jnp.max(score, axis=1, keepdims=True))
    alpha = jnp.exp(m_prev - m_new)                                 # (1, 1)
    e = jnp.exp(score - m_new)                                      # (1, ts); 0 at masked pos

    l_sc[...] = alpha * l_sc[...] + jnp.sum(e, axis=1, keepdims=True)
    m_sc[...] = m_new

    # ctx_flat[bd] += sum_t e[t] * h[bd, t]: MXU contraction over t. The rhs contracts on
    # its last dim, so only the tiny e vector is re-oriented — the streamed (BD, ts) h tile
    # is never transposed.
    contrib = jax.lax.dot_general(
        h, e.astype(h.dtype),
        dimension_numbers=(((1,), (1,)), ((), ())),
        preferred_element_type=jnp.float32,
        precision=jax.lax.Precision.HIGHEST)                        # (BD, 1) f32
    acc_sc[...] = alpha * acc_sc[...] + contrib

    @pl.when(si == pl.num_programs(0) - 1)
    def _finalize():
        # Exact divide (runs once per call): removes the ~1e-3 uniform bias of the
        # approximate EUP reciprocal that failed the previous correctness check.
        ctx_ref[...] = (acc_sc[...] / l_sc[...]).astype(ctx_ref.dtype)


def luong_attention(decoder_state, encoder_hiddens, *, seq_tile=None,
                    tile_budget_bytes=8 * 1024 * 1024,
                    vmem_limit_bytes=48 * 1024 * 1024):
    """decoder_state: (B, D), encoder_hiddens: (B, S, D) -> context (B, D) float32.

    Defaults stay comfortably within v7x's 64 MiB physical VMEM; on v5e/v6e you can raise
    tile_budget_bytes (8-16 MiB per h buffer) and vmem_limit_bytes (64-96 MiB) for long S.
    """
    B, S, D = encoder_hiddens.shape
    assert decoder_state.shape == (B, D)
    BD = B * D

    # Keep the streamed dtype narrow: bf16 stays bf16 (halves HBM traffic in this
    # memory-bound kernel); everything else is treated as f32. Accumulation is always f32.
    if encoder_hiddens.dtype == jnp.bfloat16:
        h_dtype, itemsize, sublane = jnp.bfloat16, 2, 16
    else:
        h_dtype, itemsize, sublane = jnp.float32, 4, 8

    # One XLA transpose in the wrapper: (B,S,D) -> (B,D,S) -> (B*D, S). Amortized across
    # decode steps reusing the same encoder output; makes the kernel's h tile lane-dense
    # along S and both contractions plain 2D matmuls.
    h2d = jnp.transpose(encoder_hiddens.astype(h_dtype), (0, 2, 1)).reshape(BD, S)
    s_row = decoder_state.astype(h_dtype).reshape(1, BD)

    # Tile size along S from the PADDED VMEM footprint of one h buffer:
    #   round_up(BD, sublane) * round_up(ts, 128) * itemsize   (x2 for double buffering).
    rows_padded = _round_up(BD, sublane)
    if seq_tile is None:
        seq_tile = max(128, tile_budget_bytes // (rows_padded * itemsize))
    if seq_tile >= S:
        ts = S                                       # single full-extent block
    else:
        ts = max(128, (seq_tile // 128) * 128)       # lane-dense tiles along S
        if ts >= S:
            ts = S
    num_tiles = pl.cdiv(S, ts)
    mask_tail = (S % ts) != 0

    kernel = functools.partial(_luong_attention_kernel,
                               seq_len=S, ts=ts, mask_tail=mask_tail)

    # TODO(synk): the batch-coupled score leaves only a single reduction axis, so v7x's
    # second TensorCore stays idle; batching several decode steps per call (extra
    # "parallel" grid axis) or a split-S per-core reduction with a log-sum-exp merge would
    # drive HBM from both cores.
    ctx_flat = pl.pallas_call(
        kernel,
        out_shape=jax.ShapeDtypeStruct((BD, 1), jnp.float32),
        grid_spec=pltpu.PrefetchScalarGridSpec(
            num_scalar_prefetch=0,
            grid=(num_tiles,),
            in_specs=[
                pl.BlockSpec((1, BD), lambda si: (0, 0)),    # decoder state (resident)
                pl.BlockSpec((BD, ts), lambda si: (0, si)),  # encoder tile along S
            ],
            out_specs=pl.BlockSpec((BD, 1), lambda si: (0, 0)),
            scratch_shapes=[
                pltpu.VMEM((1, 1), jnp.float32),    # running max m
                pltpu.VMEM((1, 1), jnp.float32),    # running softmax denom l
                pltpu.VMEM((BD, 1), jnp.float32),   # running context accumulator
            ],
        ),
        compiler_params=pltpu.CompilerParams(
            dimension_semantics=("arbitrary",),      # S is a reduction axis
            vmem_limit_bytes=vmem_limit_bytes,
        ),
    )(s_row, h2d)
    return ctx_flat.reshape(B, D)


def _reference(decoder_state, encoder_hiddens):
    # Pure-JAX reference reproducing the PyTorch loop semantics exactly.
    B, S, D = encoder_hiddens.shape
    score = jnp.einsum("bd,btd->t", decoder_state, encoder_hiddens,
                       precision=jax.lax.Precision.HIGHEST)        # scalar per t
    attn = jax.nn.softmax(score)                                   # shared over batch
    ctx = jnp.einsum("t,btd->bd", attn, encoder_hiddens,
                     precision=jax.lax.Precision.HIGHEST)          # (B, D)
    return ctx


if __name__ == "__main__":
    key = jax.random.PRNGKey(0)
    k1, k2, k3, k4 = jax.random.split(key, 4)

    # Small shapes implied by the module: batch=2, enc_seq_len=8, enc_hidden=32.
    B, S, D = 2, 8, 32
    decoder_state = jax.random.normal(k1, (B, D), dtype=jnp.float32)
    encoder_hiddens = jax.random.normal(k2, (B, S, D), dtype=jnp.float32)

    out = jax.block_until_ready(luong_attention(decoder_state, encoder_hiddens))
    ref = _reference(decoder_state, encoder_hiddens)
    assert out.shape == (B, D)
    assert jnp.allclose(out, ref, atol=1e-3, rtol=1e-3), (out, ref)

    # Exercise the S-tiled online-softmax path, including a partial (masked) last tile.
    S2 = 520
    ds2 = jax.random.normal(k3, (B, D), dtype=jnp.float32)
    eh2 = jax.random.normal(k4, (B, S2, D), dtype=jnp.float32)
    out2 = jax.block_until_ready(luong_attention(ds2, eh2, seq_tile=128))
    ref2 = _reference(ds2, eh2)
    assert jnp.allclose(out2, ref2, atol=1e-3, rtol=1e-3), (out2, ref2)

    print("KERNEL_OK")
</pallas_src>

<mosaic_0001>
module attributes {stable_mosaic.version = 11 : i64} {
  func.func @_luong_attention_kernel(%arg0: i32, %arg1: memref<1x64xf32, #tpu.memory_space<vmem>>, %arg2: memref<64x8xf32, #tpu.memory_space<vmem>>, %arg3: memref<64x1xf32, #tpu.memory_space<vmem>>, %arg4: memref<1x1xf32, #tpu.memory_space<vmem>>, %arg5: memref<1x1xf32, #tpu.memory_space<vmem>>, %arg6: memref<64x1xf32, #tpu.memory_space<vmem>>) attributes {dimension_semantics = [#tpu.dimension_semantics<arbitrary>], iteration_bounds = array<i64: 1>, scalar_prefetch = 0 : i64, scratch_operands = 3 : i64, tpu.core_type = #tpu.core_type<tc>, window_params = [{pipeline_mode = #tpu.pipeline_mode<synchronous>, transform_indices = @transform_0, window_bounds = array<i64: 1, 64>}, {transform_indices = @transform_1, window_bounds = array<i64: 64, 8>}, {pipeline_mode = #tpu.pipeline_mode<synchronous>, transform_indices = @transform_2, window_bounds = array<i64: 64, 1>}]} {
    %c0_i32 = arith.constant 0 : i32
    %0 = arith.cmpi eq, %arg0, %c0_i32 : i32
    %1 = arith.extui %0 : i1 to i32
    %c0_i32_0 = arith.constant 0 : i32
    %2 = arith.cmpi ne, %1, %c0_i32_0 : i32
    scf.if %2 {
      %cst_21 = arith.constant 0xFF800000 : f32
      %31 = vector.broadcast %cst_21 : f32 to vector<1x1xf32>
      %c0_22 = arith.constant 0 : index
      %c0_23 = arith.constant 0 : index
      %32 = vector.load %arg4[%c0_22, %c0_23] : memref<1x1xf32, #tpu.memory_space<vmem>>, vector<1x1xf32>
      tpu.vector_store %arg4[%c0_22, %c0_23], %31 {strides = array<i32>} : memref<1x1xf32, #tpu.memory_space<vmem>>, vector<1x1xf32>,
      %cst_24 = arith.constant 0.000000e+00 : f32
      %33 = vector.broadcast %cst_24 : f32 to vector<1x1xf32>
      %c0_25 = arith.constant 0 : index
      %c0_26 = arith.constant 0 : index
      %34 = vector.load %arg5[%c0_25, %c0_26] : memref<1x1xf32, #tpu.memory_space<vmem>>, vector<1x1xf32>
      tpu.vector_store %arg5[%c0_25, %c0_26], %33 {strides = array<i32>} : memref<1x1xf32, #tpu.memory_space<vmem>>, vector<1x1xf32>,
      %cst_27 = arith.constant 0.000000e+00 : f32
      %35 = vector.broadcast %cst_27 : f32 to vector<64x1xf32>
      %c0_28 = arith.constant 0 : index
      %c0_29 = arith.constant 0 : index
      %36 = vector.load %arg6[%c0_28, %c0_29] : memref<64x1xf32, #tpu.memory_space<vmem>>, vector<64x1xf32>
      tpu.vector_store %arg6[%c0_28, %c0_29], %35 {strides = array<i32>} : memref<64x1xf32, #tpu.memory_space<vmem>>, vector<64x1xf32>,
    } else {
    }
    %c0 = arith.constant 0 : index
    %c0_1 = arith.constant 0 : index
    %3 = vector.load %arg1[%c0, %c0_1] : memref<1x64xf32, #tpu.memory_space<vmem>>, vector<1x64xf32>
    %c0_2 = arith.constant 0 : index
    %c0_3 = arith.constant 0 : index
    %4 = vector.load %arg2[%c0_2, %c0_3] : memref<64x8xf32, #tpu.memory_space<vmem>>, vector<64x8xf32>
    %cst = arith.constant dense<0.000000e+00> : vector<1x8xf32>
    %5 = tpu.matmul %3, %4, %cst {dimension_numbers = #tpu.dot_dimension_numbers<[1], [0], [0], [1], [0, 0, 1, 1], [], []>, precision = #tpu.contract_precision<fp32>} : vector<1x64xf32>, vector<64x8xf32>, vector<1x8xf32> -> vector<1x8xf32>
    %c0_4 = arith.constant 0 : index
    %c0_5 = arith.constant 0 : index
    %6 = vector.load %arg4[%c0_4, %c0_5] : memref<1x1xf32, #tpu.memory_space<vmem>>, vector<1x1xf32>
    %cst_6 = arith.constant dense<0xFF800000> : vector<1xf32>
    %7 = vector.multi_reduction <maximumf>, %5, %cst_6 [1] : vector<1x8xf32> to vector<1xf32>
    %8 = vector.shape_cast %7 : vector<1xf32> to vector<1x1xf32>
    %9 = arith.maximumf %6, %8 : vector<1x1xf32>
    %10 = arith.subf %6, %9 : vector<1x1xf32>
    %11 = math.exp %10 : vector<1x1xf32>
    %12 = vector.broadcast %9 : vector<1x1xf32> to vector<1x8xf32>
    %13 = arith.subf %5, %12 : vector<1x8xf32>
    %14 = math.exp %13 : vector<1x8xf32>
    %c0_7 = arith.constant 0 : index
    %c0_8 = arith.constant 0 : index
    %15 = vector.load %arg5[%c0_7, %c0_8] : memref<1x1xf32, #tpu.memory_space<vmem>>, vector<1x1xf32>
    %16 = arith.mulf %11, %15 : vector<1x1xf32>
    %cst_9 = arith.constant dense<0.000000e+00> : vector<1xf32>
    %17 = vector.multi_reduction <add>, %14, %cst_9 [1] : vector<1x8xf32> to vector<1xf32>
    %18 = vector.shape_cast %17 : vector<1xf32> to vector<1x1xf32>
    %19 = arith.addf %16, %18 : vector<1x1xf32>
    %c0_10 = arith.constant 0 : index
    %c0_11 = arith.constant 0 : index
    %20 = vector.load %arg5[%c0_10, %c0_11] : memref<1x1xf32, #tpu.memory_space<vmem>>, vector<1x1xf32>
    tpu.vector_store %arg5[%c0_10, %c0_11], %19 {strides = array<i32>} : memref<1x1xf32, #tpu.memory_space<vmem>>, vector<1x1xf32>,
    %c0_12 = arith.constant 0 : index
    %c0_13 = arith.constant 0 : index
    %21 = vector.load %arg4[%c0_12, %c0_13] : memref<1x1xf32, #tpu.memory_space<vmem>>, vector<1x1xf32>
    tpu.vector_store %arg4[%c0_12, %c0_13], %9 {strides = array<i32>} : memref<1x1xf32, #tpu.memory_space<vmem>>, vector<1x1xf32>,
    %cst_14 = arith.constant dense<0.000000e+00> : vector<64x1xf32>
    %22 = tpu.matmul %4, %14, %cst_14 {dimension_numbers = #tpu.dot_dimension_numbers<[1], [1], [0], [0], [0, 0, 1, 0], [], []>, precision = #tpu.contract_precision<fp32>} : vector<64x8xf32>, vector<1x8xf32>, vector<64x1xf32> -> vector<64x1xf32>
    %c0_15 = arith.constant 0 : index
    %c0_16 = arith.constant 0 : index
    %23 = vector.load %arg6[%c0_15, %c0_16] : memref<64x1xf32, #tpu.memory_space<vmem>>, vector<64x1xf32>
    %24 = vector.broadcast %11 : vector<1x1xf32> to vector<64x1xf32>
    %25 = arith.mulf %24, %23 : vector<64x1xf32>
    %26 = arith.addf %25, %22 : vector<64x1xf32>
    %c0_17 = arith.constant 0 : index
    %c0_18 = arith.constant 0 : index
    %27 = vector.load %arg6[%c0_17, %c0_18] : memref<64x1xf32, #tpu.memory_space<vmem>>, vector<64x1xf32>
    tpu.vector_store %arg6[%c0_17, %c0_18], %26 {strides = array<i32>} : memref<64x1xf32, #tpu.memory_space<vmem>>, vector<64x1xf32>,
    %c0_i32_19 = arith.constant 0 : i32
    %28 = arith.cmpi eq, %arg0, %c0_i32_19 : i32
    %29 = arith.extui %28 : i1 to i32
    %c0_i32_20 = arith.constant 0 : i32
    %30 = arith.cmpi ne, %29, %c0_i32_20 : i32
    scf.if %30 {
      %c0_21 = arith.constant 0 : index
      %c0_22 = arith.constant 0 : index
      %31 = vector.load %arg6[%c0_21, %c0_22] : memref<64x1xf32, #tpu.memory_space<vmem>>, vector<64x1xf32>
      %c0_23 = arith.constant 0 : index
      %c0_24 = arith.constant 0 : index
      %32 = vector.load %arg5[%c0_23, %c0_24] : memref<1x1xf32, #tpu.memory_space<vmem>>, vector<1x1xf32>
      %33 = vector.broadcast %32 : vector<1x1xf32> to vector<64x1xf32>
      %34 = arith.divf %31, %33 : vector<64x1xf32>
      %c0_25 = arith.constant 0 : index
      %c0_26 = arith.constant 0 : index
      %35 = vector.load %arg3[%c0_25, %c0_26] : memref<64x1xf32, #tpu.memory_space<vmem>>, vector<64x1xf32>
      tpu.vector_store %arg3[%c0_25, %c0_26], %34 {strides = array<i32>} : memref<64x1xf32, #tpu.memory_space<vmem>>, vector<64x1xf32>,
    } else {
    }
    return
  }
  func.func @transform_0(%arg0: i32) -> (i32, i32) {
    %c0_i32 = arith.constant 0 : i32
    %c0_i32_0 = arith.constant 0 : i32
    %c0_i32_1 = arith.constant 0 : i32
    return %c0_i32, %c0_i32_0 : i32, i32
  }
  func.func @transform_1(%arg0: i32) -> (i32, i32) {
    %c0_i32 = arith.constant 0 : i32
    %c0_i32_0 = arith.constant 0 : i32
    return %c0_i32, %arg0 : i32, i32
  }
  func.func @transform_2(%arg0: i32) -> (i32, i32) {
    %c0_i32 = arith.constant 0 : i32
    %c0_i32_0 = arith.constant 0 : i32
    %c0_i32_1 = arith.constant 0 : i32
    return %c0_i32, %c0_i32_0 : i32, i32
  }
}

</mosaic_0001>

<llo_original>
// kernel: tpu_custom_call.1
$region0: #{tpu_custom_call.1}
  #allocation0 [shape = 'u32[]', space=smem, size = 0x4, offset = 0x4, fixed_abs, tag = 'smem constant byte address 0x4 - core index']
  #allocation1 [shape = 'u32[144,128]{1,0:T(1,128)}', space=vmem, size = 0x12000, scoped, tag = 'internal scratch']
  #allocation2 [shape = 'f32[1,1]{1,0:T(1,128)}', space=vmem, size = 0x200, scoped, tag = 'scratch operand']
  #allocation3 [shape = 'f32[1,1]{1,0:T(1,128)}', space=vmem, size = 0x200, scoped, tag = 'scratch operand']
  #allocation4 [shape = 'f32[64,1]{1,0:T(8,128)}', space=vmem, size = 0x8000, scoped, tag = 'scratch operand']
  %s0 = inlined_call_operand.vmem [shape: f32[1,64], index: 0, kind: input, shape index: {}]
  %s1 = inlined_call_operand.vmem [shape: f32[64,8], index: 1, kind: input, shape index: {}]
  %s2 = inlined_call_operand.vmem [shape: f32[64,1], index: 2, kind: output, shape index: {}]
  %s3 = sld [smem:[#allocation0]]
  $region26: #{tpu_custom_call.1} parent=0
    _
  %s5 = ssub.s32 1, %s3
  %s6 = scalar_select 0, %s5, %s3
  // Predicated region
  $region2: #{tpu_custom_call.1} parent=0 // pred_check
    _
  $region3: #{tpu_custom_call.1} parent=0 // pred_check_branch
    %8 = sbr.rel (0) target = $region5
  $region4: #{tpu_custom_call.1} parent=0 // pred_region
    _
  $region5: #{tpu_custom_call.1} parent=0 // pred_fallthru
    _
  // Predicated region
  $region6: #{tpu_custom_call.1} parent=0 // pred_check
    _
  $region7: #{tpu_custom_call.1} parent=0 // pred_check_branch
    %10 = sbr.rel (0) target = $region9
  $region8: #{tpu_custom_call.1} parent=0 // pred_region
    _
  $region9: #{tpu_custom_call.1} parent=0 // pred_fallthru
    _
  %p11 = scmp.eq.s32.totalorder 0, 0
  // Predicated region
  $region10: #{tpu_custom_call.1} parent=0 // pred_check
    %p12 = pneg %p11
  $region11: #{tpu_custom_call.1} parent=0 // pred_check_branch
    %14 = sbr.rel (%p12) target = $region13
  $region12: #{tpu_custom_call.1} parent=0 // pred_region
    %vm15 = vcmask 0
    %16 = vst.msk [vmem:[#allocation2] sm:$0x1] %vm15, -inf
    %17 = vst.msk [vmem:[#allocation3] sm:$0x1] %vm15, 0.0
    %vm18 = vcmask 7168
    %19 = vst.msk [vmem:[#allocation4] sm:$0xff] %vm18, 0.0
    %20 = vst.msk [vmem:[#allocation4 + $0x8] sm:$0xff] %vm18, 0.0
    %21 = vst.msk [vmem:[#allocation4 + $0x10] sm:$0xff] %vm18, 0.0
    %22 = vst.msk [vmem:[#allocation4 + $0x18] sm:$0xff] %vm18, 0.0
    %23 = vst.msk [vmem:[#allocation4 + $0x20] sm:$0xff] %vm18, 0.0
    %24 = vst.msk [vmem:[#allocation4 + $0x28] sm:$0xff] %vm18, 0.0
    %25 = vst.msk [vmem:[#allocation4 + $0x30] sm:$0xff] %vm18, 0.0
    %26 = vst.msk [vmem:[#allocation4 + $0x38] sm:$0xff] %vm18, 0.0
  $region13: #{tpu_custom_call.1} parent=0 // pred_fallthru
    _
  %v27 = vld [vmem:[%s0] sm:$0x1]
  %v28 = vld [vmem:[%s1] sm:$0xff]
  %v29 = vld [vmem:[%s1 + $0x8] sm:$0xff]
  %v30 = vld [vmem:[%s1 + $0x10] sm:$0xff]
  %v31 = vld [vmem:[%s1 + $0x18] sm:$0xff]
  %v32 = vld [vmem:[%s1 + $0x20] sm:$0xff]
  %v33 = vld [vmem:[%s1 + $0x28] sm:$0xff]
  %v34 = vld [vmem:[%s1 + $0x30] sm:$0xff]
  %v35 = vld [vmem:[%s1 + $0x38] sm:$0xff]
  %vm36 = vcmask 523264
  %v38 = vsel %vm36, %v27, 0
  %40 = vmatprep.subr.mxu0 0.0
  %41 = vmatpush1.msra.mxu0 0.0
  %42 = vmatprep.subr.mxu0 0.0
  %43 = vmatpush1.msra.mxu0 0.0
  %44 = vmatprep.subr.mxu0 0.0
  %45 = vmatpush1.msra.mxu0 0.0
  %46 = vmatprep.subr.mxu0 0.0
  %47 = vmatpush1.msra.mxu0 0.0
  %48 = vmatprep.subr.mxu0 0.0
  %49 = vmatpush1.msra.mxu0 0.0
  %50 = vmatprep.subr.mxu0 0.0
  %51 = vmatpush1.msra.mxu0 0.0
  %52 = vmatprep.subr.mxu0 0.0
  %53 = vmatpush1.msra.mxu0 0.0
  %54 = vmatprep.subr.mxu0 0.0
  %55 = vmatpush1.msra.mxu0 0.0
  %56 = vmatprep.subr.mxu0 0.0
  %v57 = vand.u32 %v35, 4294901760
  %58 = vmatpush1.msra.mxu0 %v57
  %59 = vmatprep.subr.mxu0 0.0
  %v60 = vand.u32 %v34, 4294901760
  %61 = vmatpush1.msra.mxu0 %v60
  %62 = vmatprep.subr.mxu0 0.0
  %v63 = vand.u32 %v33, 4294901760
  %64 = vmatpush1.msra.mxu0 %v63
  %65 = vmatprep.subr.mxu0 0.0
  %v66 = vand.u32 %v32, 4294901760
  %67 = vmatpush1.msra.mxu0 %v66
  %68 = vmatprep.subr.mxu0 0.0
  %v69 = vand.u32 %v31, 4294901760
  %70 = vmatpush1.msra.mxu0 %v69
  %71 = vmatprep.subr.mxu0 0.0
  %v72 = vand.u32 %v30, 4294901760
  %73 = vmatpush1.msra.mxu0 %v72
  %74 = vmatprep.subr.mxu0 0.0
  %v75 = vand.u32 %v29, 4294901760
  %76 = vmatpush1.msra.mxu0 %v75
  %77 = vmatprep.subr.mxu0 0.0
  %v78 = vand.u32 %v28, 4294901760
  %79 = vmatpush1.msra.mxu0 %v78
  %80 = vmatprep.subr.mxu0 0.0
  %81 = vmatpush2.msra.mxu0 0.0
  %82 = vmatprep.subr.mxu0 0.0
  %83 = vmatpush2.msra.mxu0 0.0
  %84 = vmatprep.subr.mxu0 0.0
  %85 = vmatpush2.msra.mxu0 0.0
  %86 = vmatprep.subr.mxu0 0.0
  %87 = vmatpush2.msra.mxu0 0.0
  %88 = vmatprep.subr.mxu0 0.0
  %89 = vmatpush2.msra.mxu0 0.0
  %90 = vmatprep.subr.mxu0 0.0
  %91 = vmatpush2.msra.mxu0 0.0
  %92 = vmatprep.subr.mxu0 0.0
  %93 = vmatpush2.msra.mxu0 0.0
  %94 = vmatprep.subr.mxu0 0.0
  %95 = vmatpush2.msra.mxu0 0.0
  %96 = vmatprep.subr.mxu0 0.0
  %97 = vmatpush2.msra.mxu0 0.0
  %98 = vmatprep.subr.mxu0 0.0
  %99 = vmatpush2.msra.mxu0 0.0
  %100 = vmatprep.subr.mxu0 0.0
  %101 = vmatpush2.msra.mxu0 0.0
  %102 = vmatprep.subr.mxu0 0.0
  %103 = vmatpush2.msra.mxu0 0.0
  %104 = vmatprep.subr.mxu0 0.0
  %105 = vmatpush2.msra.mxu0 0.0
  %106 = vmatprep.subr.mxu0 0.0
  %107 = vmatpush2.msra.mxu0 0.0
  %108 = vmatprep.subr.mxu0 0.0
  %109 = vmatpush2.msra.mxu0 0.0
  %110 = vmatprep.subr.mxu0 0.0
  %111 = vmatpush2.msra.mxu0 0.0
  %112 = vmatprep.mubr.f32.mxu0 0.0
  %v113 = vand.u32 %v38, 4294901760
  %v114 = vsub.f32 %v38, %v113
  %v115 = vand.u32 %v114, 4294901760
  %v116 = vsub.f32 %v114, %v115
  %v117 = vand.u32 %v116, 4294901760
  %118 = vmatmul.mubr.f32.gmra.mxu0 %v117
  %v119 = vpop.f32.mrf.mxu0
  %v120 = vadd.f32 0.0, %v119
  %v121 = vpop.f32.mrf.mxu0
  %122 = vdwg.mxu0
  %123 = vmatprep.subr.mxu0 0.0
  %124 = vmatpush1.msra.mxu0 0.0
  %125 = vmatprep.subr.mxu0 0.0
  %126 = vmatpush1.msra.mxu0 0.0
  %127 = vmatprep.subr.mxu0 0.0
  %128 = vmatpush1.msra.mxu0 0.0
  %129 = vmatprep.subr.mxu0 0.0
  %130 = vmatpush1.msra.mxu0 0.0
  %131 = vmatprep.subr.mxu0 0.0
  %132 = vmatpush1.msra.mxu0 0.0
  %133 = vmatprep.subr.mxu0 0.0
  %134 = vmatpush1.msra.mxu0 0.0
  %135 = vmatprep.subr.mxu0 0.0
  %136 = vmatpush1.msra.mxu0 0.0
  %137 = vmatprep.subr.mxu0 0.0
  %138 = vmatpush1.msra.mxu0 0.0
  %139 = vmatprep.subr.mxu0 0.0
  %v140 = vand.u32 %v35, 4294901760
  %v141 = vsub.f32 %v35, %v140
  %v142 = vand.u32 %v141, 4294901760
  %v143 = vsub.f32 %v141, %v142
  %v144 = vand.u32 %v143, 4294901760
  %145 = vmatpush1.msra.mxu0 %v144
  %146 = vmatprep.subr.mxu0 0.0
  %v147 = vand.u32 %v34, 4294901760
  %v148 = vsub.f32 %v34, %v147
  %v149 = vand.u32 %v148, 4294901760
  %v150 = vsub.f32 %v148, %v149
  %v151 = vand.u32 %v150, 4294901760
  %152 = vmatpush1.msra.mxu0 %v151
  %153 = vmatprep.subr.mxu0 0.0
  %v154 = vand.u32 %v33, 4294901760
  %v155 = vsub.f32 %v33, %v154
  %v156 = vand.u32 %v155, 4294901760
  %v157 = vsub.f32 %v155, %v156
  %v158 = vand.u32 %v157, 4294901760
  %159 = vmatpush1.msra.mxu0 %v158
  %160 = vmatprep.subr.mxu0 0.0
  %v161 = vand.u32 %v32, 4294901760
  %v162 = vsub.f32 %v32, %v161
  %v163 = vand.u32 %v162, 4294901760
  %v164 = vsub.f32 %v162, %v163
  %v165 = vand.u32 %v164, 4294901760
  %166 = vmatpush1.msra.mxu0 %v165
  %167 = vmatprep.subr.mxu0 0.0
  %v168 = vand.u32 %v31, 4294901760
  %v169 = vsub.f32 %v31, %v168
  %v170 = vand.u32 %v169, 4294901760
  %v171 = vsub.f32 %v169, %v170
  %v172 = vand.u32 %v171, 4294901760
  %173 = vmatpush1.msra.mxu0 %v172
  %174 = vmatprep.subr.mxu0 0.0
  %v175 = vand.u32 %v30, 4294901760
  %v176 = vsub.f32 %v30, %v175
  %v177 = vand.u32 %v176, 4294901760
  %v178 = vsub.f32 %v176, %v177
  %v179 = vand.u32 %v178, 4294901760
  %180 = vmatpush1.msra.mxu0 %v179
  %181 = vmatprep.subr.mxu0 0.0
  %v182 = vand.u32 %v29, 4294901760
  %v183 = vsub.f32 %v29, %v182
  %v184 = vand.u32 %v183, 4294901760
  %v185 = vsub.f32 %v183, %v184
  %v186 = vand.u32 %v185, 4294901760
  %187 = vmatpush1.msra.mxu0 %v186
  %188 = vmatprep.subr.mxu0 0.0
  %v189 = vand.u32 %v28, 4294901760
  %v190 = vsub.f32 %v28, %v189
  %v191 = vand.u32 %v190, 4294901760
  %v192 = vsub.f32 %v190, %v191
  %v193 = vand.u32 %v192, 4294901760
  %194 = vmatpush1.msra.mxu0 %v193
  %195 = vmatprep.subr.mxu0 0.0
  %196 = vmatpush2.msra.mxu0 0.0
  %197 = vmatprep.subr.mxu0 0.0
  %198 = vmatpush2.msra.mxu0 0.0
  %199 = vmatprep.subr.mxu0 0.0
  %200 = vmatpush2.msra.mxu0 0.0
  %201 = vmatprep.subr.mxu0 0.0
  %202 = vmatpush2.msra.mxu0 0.0
  %203 = vmatprep.subr.mxu0 0.0
  %204 = vmatpush2.msra.mxu0 0.0
  %205 = vmatprep.subr.mxu0 0.0
  %206 = vmatpush2.msra.mxu0 0.0
  %207 = vmatprep.subr.mxu0 0.0
  %208 = vmatpush2.msra.mxu0 0.0
  %209 = vmatprep.subr.mxu0 0.0
  %210 = vmatpush2.msra.mxu0 0.0
  %211 = vmatprep.subr.mxu0 0.0
  %212 = vmatpush2.msra.mxu0 0.0
  %213 = vmatprep.subr.mxu0 0.0
  %214 = vmatpush2.msra.mxu0 0.0
  %215 = vmatprep.subr.mxu0 0.0
  %216 = vmatpush2.msra.mxu0 0.0
  %217 = vmatprep.subr.mxu0 0.0
  %218 = vmatpush2.msra.mxu0 0.0
  %219 = vmatprep.subr.mxu0 0.0
  %220 = vmatpush2.msra.mxu0 0.0
  %221 = vmatprep.subr.mxu0 0.0
  %222 = vmatpush2.msra.mxu0 0.0
  %223 = vmatprep.subr.mxu0 0.0
  %224 = vmatpush2.msra.mxu0 0.0
  %225 = vmatprep.subr.mxu0 0.0
  %226 = vmatpush2.msra.mxu0 0.0
  %227 = vmatprep.mubr.f32.mxu0 0.0
  %v228 = vand.u32 %v38, 4294901760
  %229 = vmatmul.mubr.f32.gmra.mxu0 %v228
  %v230 = vpop.f32.mrf.mxu0
  %v231 = vadd.f32 %v120, %v230
  %v232 = vpop.f32.mrf.mxu0
  %233 = vdwg.mxu0
  %234 = vmatprep.subr.mxu0 0.0
  %235 = vmatpush1.msra.mxu0 0.0
  %236 = vmatprep.subr.mxu0 0.0
  %237 = vmatpush1.msra.mxu0 0.0
  %238 = vmatprep.subr.mxu0 0.0
  %239 = vmatpush1.msra.mxu0 0.0
  %240 = vmatprep.subr.mxu0 0.0
  %241 = vmatpush1.msra.mxu0 0.0
  %242 = vmatprep.subr.mxu0 0.0
  %243 = vmatpush1.msra.mxu0 0.0
  %244 = vmatprep.subr.mxu0 0.0
  %245 = vmatpush1.msra.mxu0 0.0
  %246 = vmatprep.subr.mxu0 0.0
  %247 = vmatpush1.msra.mxu0 0.0
  %248 = vmatprep.subr.mxu0 0.0
  %249 = vmatpush1.msra.mxu0 0.0
  %250 = vmatprep.subr.mxu0 0.0
  %v251 = vand.u32 %v35, 4294901760
  %v252 = vsub.f32 %v35, %v251
  %253 = vmatpush1.msra.mxu0 %v252
  %254 = vmatprep.subr.mxu0 0.0
  %v255 = vand.u32 %v34, 4294901760
  %v256 = vsub.f32 %v34, %v255
  %257 = vmatpush1.msra.mxu0 %v256
  %258 = vmatprep.subr.mxu0 0.0
  %v259 = vand.u32 %v33, 4294901760
  %v260 = vsub.f32 %v33, %v259
  %261 = vmatpush1.msra.mxu0 %v260
  %262 = vmatprep.subr.mxu0 0.0
  %v263 = vand.u32 %v32, 4294901760
  %v264 = vsub.f32 %v32, %v263
  %265 = vmatpush1.msra.mxu0 %v264
  %266 = vmatprep.subr.mxu0 0.0
  %v267 = vand.u32 %v31, 4294901760
  %v268 = vsub.f32 %v31, %v267
  %269 = vmatpush1.msra.mxu0 %v268
  %270 = vmatprep.subr.mxu0 0.0
  %v271 = vand.u32 %v30, 4294901760
  %v272 = vsub.f32 %v30, %v271
  %273 = vmatpush1.msra.mxu0 %v272
  %274 = vmatprep.subr.mxu0 0.0
  %v275 = vand.u32 %v29, 4294901760
  %v276 = vsub.f32 %v29, %v275
  %277 = vmatpush1.msra.mxu0 %v276
  %278 = vmatprep.subr.mxu0 0.0
  %v279 = vand.u32 %v28, 4294901760
  %v280 = vsub.f32 %v28, %v279
  %281 = vmatpush1.msra.mxu0 %v280
  %282 = vmatprep.subr.mxu0 0.0
  %283 = vmatpush2.msra.mxu0 0.0
  %284 = vmatprep.subr.mxu0 0.0
  %285 = vmatpush2.msra.mxu0 0.0
  %286 = vmatprep.subr.mxu0 0.0
  %287 = vmatpush2.msra.mxu0 0.0
  %288 = vmatprep.subr.mxu0 0.0
  %289 = vmatpush2.msra.mxu0 0.0
  %290 = vmatprep.subr.mxu0 0.0
  %291 = vmatpush2.msra.mxu0 0.0
  %292 = vmatprep.subr.mxu0 0.0
  %293 = vmatpush2.msra.mxu0 0.0
  %294 = vmatprep.subr.mxu0 0.0
  %295 = vmatpush2.msra.mxu0 0.0
  %296 = vmatprep.subr.mxu0 0.0
  %297 = vmatpush2.msra.mxu0 0.0
  %298 = vmatprep.subr.mxu0 0.0
  %299 = vmatpush2.msra.mxu0 0.0
  %300 = vmatprep.subr.mxu0 0.0
  %301 = vmatpush2.msra.mxu0 0.0
  %302 = vmatprep.subr.mxu0 0.0
  %303 = vmatpush2.msra.mxu0 0.0
  %304 = vmatprep.subr.mxu0 0.0
  %305 = vmatpush2.msra.mxu0 0.0
  %306 = vmatprep.subr.mxu0 0.0
  %307 = vmatpush2.msra.mxu0 0.0
  %308 = vmatprep.subr.mxu0 0.0
  %309 = vmatpush2.msra.mxu0 0.0
  %310 = vmatprep.subr.mxu0 0.0
  %311 = vmatpush2.msra.mxu0 0.0
  %312 = vmatprep.subr.mxu0 0.0
  %313 = vmatpush2.msra.mxu0 0.0
  %314 = vmatprep.mubr.f32.mxu0 0.0
  %v315 = vand.u32 %v38, 4294901760
  %v316 = vsub.f32 %v38, %v315
  %317 = vmatmul.mubr.f32.gmra.mxu0 %v316
  %v318 = vpop.f32.mrf.mxu0
  %v319 = vadd.f32 %v231, %v318
  %v320 = vpop.f32.mrf.mxu0
  %321 = vdwg.mxu0
  %322 = vmatprep.subr.mxu0 0.0
  %323 = vmatpush1.msra.mxu0 0.0
  %324 = vmatprep.subr.mxu0 0.0
  %325 = vmatpush1.msra.mxu0 0.0
  %326 = vmatprep.subr.mxu0 0.0
  %327 = vmatpush1.msra.mxu0 0.0
  %328 = vmatprep.subr.mxu0 0.0
  %329 = vmatpush1.msra.mxu0 0.0
  %330 = vmatprep.subr.mxu0 0.0
  %331 = vmatpush1.msra.mxu0 0.0
  %332 = vmatprep.subr.mxu0 0.0
  %333 = vmatpush1.msra.mxu0 0.0
  %334 = vmatprep.subr.mxu0 0.0
  %335 = vmatpush1.msra.mxu0 0.0
  %336 = vmatprep.subr.mxu0 0.0
  %337 = vmatpush1.msra.mxu0 0.0
  %338 = vmatprep.subr.mxu0 0.0
  %v339 = vand.u32 %v35, 4294901760
  %340 = vmatpush1.msra.mxu0 %v339
  %341 = vmatprep.subr.mxu0 0.0
  %v342 = vand.u32 %v34, 4294901760
  %343 = vmatpush1.msra.mxu0 %v342
  %344 = vmatprep.subr.mxu0 0.0
  %v345 = vand.u32 %v33, 4294901760
  %346 = vmatpush1.msra.mxu0 %v345
  %347 = vmatprep.subr.mxu0 0.0
  %v348 = vand.u32 %v32, 4294901760
  %349 = vmatpush1.msra.mxu0 %v348
  %350 = vmatprep.subr.mxu0 0.0
  %v351 = vand.u32 %v31, 4294901760
  %352 = vmatpush1.msra.mxu0 %v351
  %353 = vmatprep.subr.mxu0 0.0
  %v354 = vand.u32 %v30, 4294901760
  %355 = vmatpush1.msra.mxu0 %v354
  %356 = vmatprep.subr.mxu0 0.0
  %v357 = vand.u32 %v29, 4294901760
  %358 = vmatpush1.msra.mxu0 %v357
  %359 = vmatprep.subr.mxu0 0.0
  %v360 = vand.u32 %v28, 4294901760
  %361 = vmatpush1.msra.mxu0 %v360
  %362 = vmatprep.subr.mxu0 0.0
  %363 = vmatpush2.msra.mxu0 0.0
  %364 = vmatprep.subr.mxu0 0.0
  %365 = vmatpush2.msra.mxu0 0.0
  %366 = vmatprep.subr.mxu0 0.0
  %367 = vmatpush2.msra.mxu0 0.0
  %368 = vmatprep.subr.mxu0 0.0
  %369 = vmatpush2.msra.mxu0 0.0
  %370 = vmatprep.subr.mxu0 0.0
  %371 = vmatpush2.msra.mxu0 0.0
  %372 = vmatprep.subr.mxu0 0.0
  %373 = vmatpush2.msra.mxu0 0.0
  %374 = vmatprep.subr.mxu0 0.0
  %375 = vmatpush2.msra.mxu0 0.0
  %376 = vmatprep.subr.mxu0 0.0
  %377 = vmatpush2.msra.mxu0 0.0
  %378 = vmatprep.subr.mxu0 0.0
  %379 = vmatpush2.msra.mxu0 0.0
  %380 = vmatprep.subr.mxu0 0.0
  %381 = vmatpush2.msra.mxu0 0.0
  %382 = vmatprep.subr.mxu0 0.0
  %383 = vmatpush2.msra.mxu0 0.0
  %384 = vmatprep.subr.mxu0 0.0
  %385 = vmatpush2.msra.mxu0 0.0
  %386 = vmatprep.subr.mxu0 0.0
  %387 = vmatpush2.msra.mxu0 0.0
  %388 = vmatprep.subr.mxu0 0.0
  %389 = vmatpush2.msra.mxu0 0.0
  %390 = vmatprep.subr.mxu0 0.0
  %391 = vmatpush2.msra.mxu0 0.0
  %392 = vmatprep.subr.mxu0 0.0
  %393 = vmatpush2.msra.mxu0 0.0
  %394 = vmatprep.mubr.f32.mxu0 0.0
  %v395 = vand.u32 %v38, 4294901760
  %v396 = vsub.f32 %v38, %v395
  %v397 = vand.u32 %v396, 4294901760
  %398 = vmatmul.mubr.f32.gmra.mxu0 %v397
  %v399 = vpop.f32.mrf.mxu0
  %v400 = vadd.f32 %v319, %v399
  %v401 = vpop.f32.mrf.mxu0
  %402 = vdwg.mxu0
  %403 = vmatprep.subr.mxu0 0.0
  %404 = vmatpush1.msra.mxu0 0.0
  %405 = vmatprep.subr.mxu0 0.0
  %406 = vmatpush1.msra.mxu0 0.0
  %407 = vmatprep.subr.mxu0 0.0
  %408 = vmatpush1.msra.mxu0 0.0
  %409 = vmatprep.subr.mxu0 0.0
  %410 = vmatpush1.msra.mxu0 0.0
  %411 = vmatprep.subr.mxu0 0.0
  %412 = vmatpush1.msra.mxu0 0.0
  %413 = vmatprep.subr.mxu0 0.0
  %414 = vmatpush1.msra.mxu0 0.0
  %415 = vmatprep.subr.mxu0 0.0
  %416 = vmatpush1.msra.mxu0 0.0
  %417 = vmatprep.subr.mxu0 0.0
  %418 = vmatpush1.msra.mxu0 0.0
  %419 = vmatprep.subr.mxu0 0.0
  %v420 = vand.u32 %v35, 4294901760
  %v421 = vsub.f32 %v35, %v420
  %v422 = vand.u32 %v421, 4294901760
  %423 = vmatpush1.msra.mxu0 %v422
  %424 = vmatprep.subr.mxu0 0.0
  %v425 = vand.u32 %v34, 4294901760
  %v426 = vsub.f32 %v34, %v425
  %v427 = vand.u32 %v426, 4294901760
  %428 = vmatpush1.msra.mxu0 %v427
  %429 = vmatprep.subr.mxu0 0.0
  %v430 = vand.u32 %v33, 4294901760
  %v431 = vsub.f32 %v33, %v430
  %v432 = vand.u32 %v431, 4294901760
  %433 = vmatpush1.msra.mxu0 %v432
  %434 = vmatprep.subr.mxu0 0.0
  %v435 = vand.u32 %v32, 4294901760
  %v436 = vsub.f32 %v32, %v435
  %v437 = vand.u32 %v436, 4294901760
  %438 = vmatpush1.msra.mxu0 %v437
  %439 = vmatprep.subr.mxu0 0.0
  %v440 = vand.u32 %v31, 4294901760
  %v441 = vsub.f32 %v31, %v440
  %v442 = vand.u32 %v441, 4294901760
  %443 = vmatpush1.msra.mxu0 %v442
  %444 = vmatprep.subr.mxu0 0.0
  %v445 = vand.u32 %v30, 4294901760
  %v446 = vsub.f32 %v30, %v445
  %v447 = vand.u32 %v446, 4294901760
  %448 = vmatpush1.msra.mxu0 %v447
  %449 = vmatprep.subr.mxu0 0.0
  %v450 = vand.u32 %v29, 4294901760
  %v451 = vsub.f32 %v29, %v450
  %v452 = vand.u32 %v451, 4294901760
  %453 = vmatpush1.msra.mxu0 %v452
  %454 = vmatprep.subr.mxu0 0.0
  %v455 = vand.u32 %v28, 4294901760
  %v456 = vsub.f32 %v28, %v455
  %v457 = vand.u32 %v456, 4294901760
  %458 = vmatpush1.msra.mxu0 %v457
  %459 = vmatprep.subr.mxu0 0.0
  %460 = vmatpush2.msra.mxu0 0.0
  %461 = vmatprep.subr.mxu0 0.0
  %462 = vmatpush2.msra.mxu0 0.0
  %463 = vmatprep.subr.mxu0 0.0
  %464 = vmatpush2.msra.mxu0 0.0
  %465 = vmatprep.subr.mxu0 0.0
  %466 = vmatpush2.msra.mxu0 0.0
  %467 = vmatprep.subr.mxu0 0.0
  %468 = vmatpush2.msra.mxu0 0.0
  %469 = vmatprep.subr.mxu0 0.0
  %470 = vmatpush2.msra.mxu0 0.0
  %471 = vmatprep.subr.mxu0 0.0
  %472 = vmatpush2.msra.mxu0 0.0
  %473 = vmatprep.subr.mxu0 0.0
  %474 = vmatpush2.msra.mxu0 0.0
  %475 = vmatprep.subr.mxu0 0.0
  %476 = vmatpush2.msra.mxu0 0.0
  %477 = vmatprep.subr.mxu0 0.0
  %478 = vmatpush2.msra.mxu0 0.0
  %479 = vmatprep.subr.mxu0 0.0
  %480 = vmatpush2.msra.mxu0 0.0
  %481 = vmatprep.subr.mxu0 0.0
  %482 = vmatpush2.msra.mxu0 0.0
  %483 = vmatprep.subr.mxu0 0.0
  %484 = vmatpush2.msra.mxu0 0.0
  %485 = vmatprep.subr.mxu0 0.0
  %486 = vmatpush2.msra.mxu0 0.0
  %487 = vmatprep.subr.mxu0 0.0
  %488 = vmatpush2.msra.mxu0 0.0
  %489 = vmatprep.subr.mxu0 0.0
  %490 = vmatpush2.msra.mxu0 0.0
  %491 = vmatprep.mubr.f32.mxu0 0.0
  %v492 = vand.u32 %v38, 4294901760
  %493 = vmatmul.mubr.f32.gmra.mxu0 %v492
  %v494 = vpop.f32.mrf.mxu0
  %v495 = vadd.f32 %v400, %v494
  %v496 = vpop.f32.mrf.mxu0
  %497 = vdwg.mxu0
  %498 = vmatprep.subr.mxu0 0.0
  %499 = vmatpush1.msra.mxu0 0.0
  %500 = vmatprep.subr.mxu0 0.0
  %501 = vmatpush1.msra.mxu0 0.0
  %502 = vmatprep.subr.mxu0 0.0
  %503 = vmatpush1.msra.mxu0 0.0
  %504 = vmatprep.subr.mxu0 0.0
  %505 = vmatpush1.msra.mxu0 0.0
  %506 = vmatprep.subr.mxu0 0.0
  %507 = vmatpush1.msra.mxu0 0.0
  %508 = vmatprep.subr.mxu0 0.0
  %509 = vmatpush1.msra.mxu0 0.0
  %510 = vmatprep.subr.mxu0 0.0
  %511 = vmatpush1.msra.mxu0 0.0
  %512 = vmatprep.subr.mxu0 0.0
  %513 = vmatpush1.msra.mxu0 0.0
  %514 = vmatprep.subr.mxu0 0.0
  %v515 = vand.u32 %v35, 4294901760
  %516 = vmatpush1.msra.mxu0 %v515
  %517 = vmatprep.subr.mxu0 0.0
  %v518 = vand.u32 %v34, 4294901760
  %519 = vmatpush1.msra.mxu0 %v518
  %520 = vmatprep.subr.mxu0 0.0
  %v521 = vand.u32 %v33, 4294901760
  %522 = vmatpush1.msra.mxu0 %v521
  %523 = vmatprep.subr.mxu0 0.0
  %v524 = vand.u32 %v32, 4294901760
  %525 = vmatpush1.msra.mxu0 %v524
  %526 = vmatprep.subr.mxu0 0.0
  %v527 = vand.u32 %v31, 4294901760
  %528 = vmatpush1.msra.mxu0 %v527
  %529 = vmatprep.subr.mxu0 0.0
  %v530 = vand.u32 %v30, 4294901760
  %531 = vmatpush1.msra.mxu0 %v530
  %532 = vmatprep.subr.mxu0 0.0
  %v533 = vand.u32 %v29, 4294901760
  %534 = vmatpush1.msra.mxu0 %v533
  %535 = vmatprep.subr.mxu0 0.0
  %v536 = vand.u32 %v28, 4294901760
  %537 = vmatpush1.msra.mxu0 %v536
  %538 = vmatprep.subr.mxu0 0.0
  %539 = vmatpush2.msra.mxu0 0.0
  %540 = vmatprep.subr.mxu0 0.0
  %541 = vmatpush2.msra.mxu0 0.0
  %542 = vmatprep.subr.mxu0 0.0
  %543 = vmatpush2.msra.mxu0 0.0
  %544 = vmatprep.subr.mxu0 0.0
  %545 = vmatpush2.msra.mxu0 0.0
  %546 = vmatprep.subr.mxu0 0.0
  %547 = vmatpush2.msra.mxu0 0.0
  %548 = vmatprep.subr.mxu0 0.0
  %549 = vmatpush2.msra.mxu0 0.0
  %550 = vmatprep.subr.mxu0 0.0
  %551 = vmatpush2.msra.mxu0 0.0
  %552 = vmatprep.subr.mxu0 0.0
  %553 = vmatpush2.msra.mxu0 0.0
  %554 = vmatprep.subr.mxu0 0.0
  %555 = vmatpush2.msra.mxu0 0.0
  %556 = vmatprep.subr.mxu0 0.0
  %557 = vmatpush2.msra.mxu0 0.0
  %558 = vmatprep.subr.mxu0 0.0
  %559 = vmatpush2.msra.mxu0 0.0
  %560 = vmatprep.subr.mxu0 0.0
  %561 = vmatpush2.msra.mxu0 0.0
  %562 = vmatprep.subr.mxu0 0.0
  %563 = vmatpush2.msra.mxu0 0.0
  %564 = vmatprep.subr.mxu0 0.0
  %565 = vmatpush2.msra.mxu0 0.0
  %566 = vmatprep.subr.mxu0 0.0
  %567 = vmatpush2.msra.mxu0 0.0
  %568 = vmatprep.subr.mxu0 0.0
  %569 = vmatpush2.msra.mxu0 0.0
  %570 = vmatprep.mubr.f32.mxu0 0.0
  %v571 = vand.u32 %v38, 4294901760
  %572 = vmatmul.mubr.f32.gmra.mxu0 %v571
  %v573 = vpop.f32.mrf.mxu0
  %v574 = vadd.f32 %v495, %v573
  %v575 = vpop.f32.mrf.mxu0
  %576 = vdwg.mxu0
  %v577 = vld [vmem:[#allocation2] sm:$0x1]
  %vm578 = vcmask 57344
  %v579 = vsel %vm578, %v574, -inf
  %580 = vmax.xlane.f32.xlu0 %v579
  %v581 = vpop.xlane.xlu0 %580
  %v582 = vmax.f32 %v577, %v581
  %v583 = vsub.f32 %v577, %v582
  %v584 = vmul.f32 %v583, 1.442695
  %v585 = vpow.pop %v584
  %587 = vset.pattern.permute.xlu0 0
  %588 = vperm.xlu0 %587, %v582
  %v589 = vpop.permute.xlu0 %588
  %v591 = vlaneseq
  %v592 = vshrl.u32 %v591, 7
  %v593 = vsub.s32 0, %v592
  %v594 = vrot.slane %v589, %v593
  %v595 = vsub.f32 %v574, %v594
  %v596 = vmul.f32 %v595, 1.442695
  %v597 = vpow.pop %v596
  %v598 = vld [vmem:[#allocation3] sm:$0x1]
  %v599 = vmul.f32 %v585, %v598
  %v600 = vsel %vm578, %v597, 0.0
  %601 = vadd.xlane.f32.xlu0 %v600
  %v602 = vpop.xlane.xlu0 %601
  %v603 = vadd.f32 %v599, %v602
  %vm604 = vcmask 0
  %605 = vst.msk [vmem:[#allocation3] sm:$0x1] %vm604, %v603
  %606 = vst.msk [vmem:[#allocation2] sm:$0x1] %vm604, %v582
  %v607 = vlaneseq
  %v608 = vshrl.u32 %v607, 7
  %v609 = vsub.s32 0, %v608
  %v610 = vrot.slane %v597, %v609
  %v611 = vmul.f32 %v28, %v610
  %v612 = vmul.f32 %v29, %v610
  %v613 = vmul.f32 %v30, %v610
  %v614 = vmul.f32 %v31, %v610
  %v615 = vmul.f32 %v32, %v610
  %v616 = vmul.f32 %v33, %v610
  %v617 = vmul.f32 %v34, %v610
  %v618 = vmul.f32 %v35, %v610
  %vm619 = vcmask 64512
  %v620 = vsel %vm619, %v611, 0.0
  %621 = vadd.xlane.f32.xlu0 %v620
  %v622 = vpop.xlane.xlu0 %621
  %v623 = vsel %vm619, %v612, 0.0
  %624 = vadd.xlane.f32.xlu0 %v623
  %v625 = vpop.xlane.xlu0 %624
  %v626 = vsel %vm619, %v613, 0.0
  %627 = vadd.xlane.f32.xlu0 %v626
  %v628 = vpop.xlane.xlu0 %627
  %v629 = vsel %vm619, %v614, 0.0
  %630 = vadd.xlane.f32.xlu0 %v629
  %v631 = vpop.xlane.xlu0 %630
  %v632 = vsel %vm619, %v615, 0.0
  %633 = vadd.xlane.f32.xlu0 %v632
  %v634 = vpop.xlane.xlu0 %633
  %v635 = vsel %vm619, %v616, 0.0
  %636 = vadd.xlane.f32.xlu0 %v635
  %v637 = vpop.xlane.xlu0 %636
  %v638 = vsel %vm619, %v617, 0.0
  %639 = vadd.xlane.f32.xlu0 %v638
  %v640 = vpop.xlane.xlu0 %639
  %v641 = vsel %vm619, %v618, 0.0
  %642 = vadd.xlane.f32.xlu0 %v641
  %v643 = vpop.xlane.xlu0 %642
  %v644 = vld [vmem:[#allocation4] sm:$0xff]
  %v645 = vld [vmem:[#allocation4 + $0x8] sm:$0xff]
  %v646 = vld [vmem:[#allocation4 + $0x10] sm:$0xff]
  %v647 = vld [vmem:[#allocation4 + $0x18] sm:$0xff]
  %v648 = vld [vmem:[#allocation4 + $0x20] sm:$0xff]
  %v649 = vld [vmem:[#allocation4 + $0x28] sm:$0xff]
  %v650 = vld [vmem:[#allocation4 + $0x30] sm:$0xff]
  %v651 = vld [vmem:[#allocation4 + $0x38] sm:$0xff]
  %v653 = vlaneseq
  %v654 = vshrl.u32 %v653, 7
  %v655 = vsub.s32 0, %v654
  %v656 = vrot.slane %v585, %v655
  %v658 = vmul.f32 %v656, %v644
  %v659 = vmul.f32 %v656, %v645
  %v660 = vmul.f32 %v656, %v646
  %v661 = vmul.f32 %v656, %v647
  %v662 = vmul.f32 %v656, %v648
  %v663 = vmul.f32 %v656, %v649
  %v664 = vmul.f32 %v656, %v650
  %v665 = vmul.f32 %v656, %v651
  %v666 = vadd.f32 %v658, %v622
  %v667 = vadd.f32 %v659, %v625
  %v668 = vadd.f32 %v660, %v628
  %v669 = vadd.f32 %v661, %v631
  %v670 = vadd.f32 %v662, %v634
  %v671 = vadd.f32 %v663, %v637
  %v672 = vadd.f32 %v664, %v640
  %v673 = vadd.f32 %v665, %v643
  %vm674 = vcmask 7168
  %675 = vst.msk [vmem:[#allocation4] sm:$0xff] %vm674, %v666
  %676 = vst.msk [vmem:[#allocation4 + $0x8] sm:$0xff] %vm674, %v667
  %677 = vst.msk [vmem:[#allocation4 + $0x10] sm:$0xff] %vm674, %v668
  %678 = vst.msk [vmem:[#allocation4 + $0x18] sm:$0xff] %vm674, %v669
  %679 = vst.msk [vmem:[#allocation4 + $0x20] sm:$0xff] %vm674, %v670
  %680 = vst.msk [vmem:[#allocation4 + $0x28] sm:$0xff] %vm674, %v671
  %681 = vst.msk [vmem:[#allocation4 + $0x30] sm:$0xff] %vm674, %v672
  %682 = vst.msk [vmem:[#allocation4 + $0x38] sm:$0xff] %vm674, %v673
  // Predicated region
  $region14: #{tpu_custom_call.1} parent=0 // pred_check
    %p683 = pneg %p11
  $region15: #{tpu_custom_call.1} parent=0 // pred_check_branch
    %685 = sbr.rel (%p683) target = $region17
  $region16: #{tpu_custom_call.1} parent=0 // pred_region
    %v686 = vld [vmem:[#allocation4] sm:$0xff]
    %v687 = vld [vmem:[#allocation4 + $0x8] sm:$0xff]
    %v688 = vld [vmem:[#allocation4 + $0x10] sm:$0xff]
    %v689 = vld [vmem:[#allocation4 + $0x18] sm:$0xff]
    %v690 = vld [vmem:[#allocation4 + $0x20] sm:$0xff]
    %v691 = vld [vmem:[#allocation4 + $0x28] sm:$0xff]
    %v692 = vld [vmem:[#allocation4 + $0x30] sm:$0xff]
    %v693 = vld [vmem:[#allocation4 + $0x38] sm:$0xff]
    %v694 = vld [vmem:[#allocation3] sm:$0x1]
    %v696 = vlaneseq
    %v697 = vshrl.u32 %v696, 7
    %v698 = vsub.s32 0, %v697
    %v699 = vrot.slane %v694, %v698
    %v701 = vrcp.pop %v699
    %v702 = vmul.f32 %v686, %v701
    %v703 = vmul.f32 %v687, %v701
    %v704 = vmul.f32 %v688, %v701
    %v705 = vmul.f32 %v689, %v701
    %v706 = vmul.f32 %v690, %v701
    %v707 = vmul.f32 %v691, %v701
    %v708 = vmul.f32 %v692, %v701
    %v709 = vmul.f32 %v693, %v701
    %710 = vst.msk [vmem:[%s2] sm:$0xff] %vm674, %v702
    %711 = vst.msk [vmem:[%s2 + $0x8] sm:$0xff] %vm674, %v703
    %712 = vst.msk [vmem:[%s2 + $0x10] sm:$0xff] %vm674, %v704
    %713 = vst.msk [vmem:[%s2 + $0x18] sm:$0xff] %vm674, %v705
    %714 = vst.msk [vmem:[%s2 + $0x20] sm:$0xff] %vm674, %v706
    %715 = vst.msk [vmem:[%s2 + $0x28] sm:$0xff] %vm674, %v707
    %716 = vst.msk [vmem:[%s2 + $0x30] sm:$0xff] %vm674, %v708
    %717 = vst.msk [vmem:[%s2 + $0x38] sm:$0xff] %vm674, %v709
  $region17: #{tpu_custom_call.1} parent=0 // pred_fallthru
    _
  // Predicated region
  $region18: #{tpu_custom_call.1} parent=0 // pred_check
    _
  $region19: #{tpu_custom_call.1} parent=0 // pred_check_branch
    %719 = sbr.rel (0) target = $region21
  $region20: #{tpu_custom_call.1} parent=0 // pred_region
    _
  $region21: #{tpu_custom_call.1} parent=0 // pred_fallthru
    _
  // Predicated region
  $region22: #{tpu_custom_call.1} parent=0 // pred_check
    _
  $region23: #{tpu_custom_call.1} parent=0 // pred_check_branch
    %721 = sbr.rel (0) target = $region25
  $region24: #{tpu_custom_call.1} parent=0 // pred_region
    _
  $region25: #{tpu_custom_call.1} parent=0 // pred_fallthru
    _

</llo_original>
